<compile_context>
chip_gen: v7x
topology: tpu7x:2x2x1
jax: 0.10.0
libtpu: 0.0.40
codegen_flags: <defaults>
</compile_context>

<pallas_src>
import jax
import jax.numpy as jnp
from jax import lax
from jax.experimental import pallas as pl
from jax.experimental.pallas import tpu as pltpu


def _msattn_kernel(x_ref, wqkv_ref, bqkv_ref, wp_ref, bp_ref, o_ref, acc_ref):
    """One (batch, head) pair per grid step.

    x_ref    : (1, N, C)     bf16  current batch element
    wqkv_ref : (1, 3, C, hd) bf16  per-head {q,k,v} weights (scale folded into q)
    bqkv_ref : (1, 3, 1, hd) f32   per-head {q,k,v} biases (scale folded into q)
    wp_ref   : (1, hd, C)    bf16  this head's rows of the output projection
    bp_ref   : (1, C)        f32   output projection bias
    o_ref    : (1, N, C)           output block (resident across the head axis)
    acc_ref  : (N, C)        f32   VMEM accumulator for the output projection
    """
    h = pl.program_id(1)
    num_h = pl.num_programs(1)

    x = x_ref[0]                                               # (N, C) bf16

    # Per-head Q/K/V projections: contraction dim is C (full MXU depth),
    # leading-axis ref indexing only (no lane slicing).
    q = jnp.dot(x, wqkv_ref[0, 0], preferred_element_type=jnp.float32) + bqkv_ref[0, 0]
    k = jnp.dot(x, wqkv_ref[0, 1], preferred_element_type=jnp.float32) + bqkv_ref[0, 1]
    v = jnp.dot(x, wqkv_ref[0, 2], preferred_element_type=jnp.float32) + bqkv_ref[0, 2]

    # scores = q @ k^T without materializing a transpose: contract last dims.
    s = lax.dot_general(
        q.astype(jnp.bfloat16), k.astype(jnp.bfloat16),
        dimension_numbers=(((1,), (1,)), ((), ())),
        preferred_element_type=jnp.float32)                    # (N, N) f32

    # Softmax in f32; reciprocal goes to the EUP slot (approx).
    s = s - jnp.max(s, axis=-1, keepdims=True)
    p = jnp.exp(s)
    p = p * pl.reciprocal(jnp.sum(p, axis=-1, keepdims=True), approx=True)

    ctx = jnp.dot(p.astype(jnp.bfloat16), v.astype(jnp.bfloat16),
                  preferred_element_type=jnp.float32)          # (N, hd)

    # This head's contribution to the output projection; summing per-head
    # partials is equivalent to concat-then-project (no jnp.concatenate).
    part = jnp.dot(ctx.astype(jnp.bfloat16), wp_ref[0],
                   preferred_element_type=jnp.float32)         # (N, C)

    @pl.when(h == 0)
    def _():
        acc_ref[...] = jnp.zeros_like(acc_ref)

    acc_ref[...] += part

    @pl.when(h == num_h - 1)
    def _():
        o_ref[0] = (acc_ref[...] + bp_ref[...]).astype(o_ref.dtype)


def pack_params(params, num_heads):
    """Repack module-layout params into the per-head layout the kernel reads.

    Folds the softmax scale into the q projection; matmul weights are stored in
    bf16 (biases stay f32).
    """
    C, D = params["w_q"].shape
    assert D == C, "MSAttention assumes inner_dim == dim"
    hd = D // num_heads
    scale = hd ** (-0.5)

    def per_head_cols(w):                       # (C, D) -> (H, C, hd)
        return w.reshape(C, num_heads, hd).transpose(1, 0, 2)

    wq = per_head_cols(params["w_q"] * scale)
    wk = per_head_cols(params["w_kv"][:, :D])
    wv = per_head_cols(params["w_kv"][:, D:])
    bq = (params["b_q"][0] * scale).reshape(num_heads, hd)
    bk = params["b_kv"][0, :D].reshape(num_heads, hd)
    bv = params["b_kv"][0, D:].reshape(num_heads, hd)

    w_qkv = jnp.stack([wq, wk, wv], axis=1).astype(jnp.bfloat16)                 # (H, 3, C, hd)
    b_qkv = jnp.stack([bq, bk, bv], axis=1)[:, :, None, :].astype(jnp.float32)   # (H, 3, 1, hd)
    w_proj = params["w_proj"].reshape(num_heads, hd, C).astype(jnp.bfloat16)     # (H, hd, C)
    b_proj = params["b_proj"].astype(jnp.float32)                                # (1, C)
    return w_qkv, b_qkv, w_proj, b_proj


def ms_attention(x, params, *, num_heads):
    """x: (B, N, C) float32. params: module-layout weights (see init_params)."""
    B, N, C = x.shape
    hd = C // num_heads
    assert num_heads * hd == C, "dim must be divisible by num_heads"

    w_qkv, b_qkv, w_proj, b_proj = pack_params(params, num_heads)
    x_bf16 = x.astype(jnp.bfloat16)

    H = num_heads
    flops = 2 * B * H * (3 * N * C * hd + 2 * N * N * hd + N * hd * C)
    transcendentals = B * H * N * N
    bytes_accessed = (B * N * C * 2            # x (bf16)
                      + H * 3 * C * hd * 2     # w_qkv (bf16)
                      + H * 3 * hd * 4         # b_qkv (f32)
                      + H * hd * C * 2         # w_proj (bf16)
                      + C * 4                  # b_proj (f32)
                      + B * N * C * 4)         # out (f32)

    grid_spec = pltpu.PrefetchScalarGridSpec(
        num_scalar_prefetch=0,
        grid=(B, H),                                             # head (reduction) axis last
        in_specs=[
            pl.BlockSpec((1, N, C), lambda b, h: (b, 0, 0)),         # x
            pl.BlockSpec((1, 3, C, hd), lambda b, h: (h, 0, 0, 0)),  # w_qkv (per head)
            pl.BlockSpec((1, 3, 1, hd), lambda b, h: (h, 0, 0, 0)),  # b_qkv (per head)
            pl.BlockSpec((1, hd, C), lambda b, h: (h, 0, 0)),        # w_proj (per head)
            pl.BlockSpec((1, C), lambda b, h: (0, 0)),               # b_proj
        ],
        out_specs=pl.BlockSpec((1, N, C), lambda b, h: (b, 0, 0)),
        scratch_shapes=[pltpu.VMEM((N, C), jnp.float32)],
    )

    return pl.pallas_call(
        _msattn_kernel,
        out_shape=jax.ShapeDtypeStruct((B, N, C), x.dtype),
        grid_spec=grid_spec,
        compiler_params=pltpu.CompilerParams(
            dimension_semantics=("parallel", "arbitrary"),
            vmem_limit_bytes=48 * 1024 * 1024,
        ),
        cost_estimate=pl.CostEstimate(
            flops=int(flops),
            transcendentals=int(transcendentals),
            bytes_accessed=int(bytes_accessed)),
    )(x_bf16, w_qkv, b_qkv, w_proj, b_proj)


def init_params(key, dim, num_heads):
    """Deterministic synthetic parameter init (shapes match the PyTorch module)."""
    head_dim = dim // num_heads
    inner = head_dim * num_heads
    k = jax.random.split(key, 6)
    s = 0.02
    return {
        # stored as (in, out): y = x @ W + b
        "w_q": s * jax.random.normal(k[0], (dim, inner), jnp.float32),
        "b_q": s * jax.random.normal(k[1], (1, inner), jnp.float32),
        "w_kv": s * jax.random.normal(k[2], (dim, 2 * inner), jnp.float32),
        "b_kv": s * jax.random.normal(k[3], (1, 2 * inner), jnp.float32),
        "w_proj": s * jax.random.normal(k[4], (dim, dim), jnp.float32),
        "b_proj": s * jax.random.normal(k[5], (1, dim), jnp.float32),
    }


def ms_attention_ref(x, params, *, num_heads):
    """Pure-JAX f32 reference mirroring the PyTorch forward."""
    B, N, C = x.shape
    hd = C // num_heads
    scale = hd ** (-0.5)
    q = x @ params["w_q"] + params["b_q"]
    kv = x @ params["w_kv"] + params["b_kv"]
    k, v = kv[..., :C], kv[..., C:]
    # (B, N, H, hd) -> (B, H, N, hd)
    r = lambda t: t.reshape(B, N, num_heads, hd).transpose(0, 2, 1, 3)
    q, k, v = r(q) * scale, r(k), r(v)
    attn = jax.nn.softmax(q @ k.transpose(0, 1, 3, 2), axis=-1)
    out = attn @ v                                          # (B, H, N, hd)
    out = out.transpose(0, 2, 1, 3).reshape(B, N, C)        # 'b h l hd -> b l (h hd)'
    return out @ params["w_proj"] + params["b_proj"]


if __name__ == "__main__":
    B, N, C = 2, 8, 32
    num_heads = 4

    key = jax.random.PRNGKey(0)
    kx, kp = jax.random.split(key)
    x = jax.random.normal(kx, (B, N, C), jnp.float32)
    params = init_params(kp, C, num_heads)

    fn = jax.jit(ms_attention, static_argnames=("num_heads",))
    out = fn(x, params, num_heads=num_heads)
    out = jax.block_until_ready(out)

    ref = ms_attention_ref(x, params, num_heads=num_heads)
    assert out.shape == (B, N, C)
    # bf16 matmul operands + approx reciprocal => slightly looser tolerance
    # than a pure-f32 implementation.
    assert jnp.allclose(out, ref, atol=2e-2, rtol=2e-2), "mismatch vs reference"

    print("KERNEL_OK")
</pallas_src>

<mosaic_0001>
module attributes {stable_mosaic.version = 11 : i64} {
  func.func @_msattn_kernel(%arg0: i32, %arg1: i32, %arg2: memref<1x8x32xbf16, #tpu.memory_space<vmem>>, %arg3: memref<1x3x32x8xbf16, #tpu.memory_space<vmem>>, %arg4: memref<1x3x1x8xf32, #tpu.memory_space<vmem>>, %arg5: memref<1x8x32xbf16, #tpu.memory_space<vmem>>, %arg6: memref<1x32xf32, #tpu.memory_space<vmem>>, %arg7: memref<1x8x32xf32, #tpu.memory_space<vmem>>, %arg8: memref<8x32xf32, #tpu.memory_space<vmem>>) attributes {dimension_semantics = [#tpu.dimension_semantics<parallel>, #tpu.dimension_semantics<arbitrary>], iteration_bounds = array<i64: 2, 4>, scalar_prefetch = 0 : i64, scratch_operands = 1 : i64, tpu.core_type = #tpu.core_type<tc>, window_params = [{transform_indices = @transform_0, window_bounds = array<i64: 1, 8, 32>}, {transform_indices = @transform_1, window_bounds = array<i64: 1, 3, 32, 8>}, {transform_indices = @transform_2, window_bounds = array<i64: 1, 3, 1, 8>}, {transform_indices = @transform_3, window_bounds = array<i64: 1, 8, 32>}, {pipeline_mode = #tpu.pipeline_mode<synchronous>, transform_indices = @transform_4, window_bounds = array<i64: 1, 32>}, {transform_indices = @transform_5, window_bounds = array<i64: 1, 8, 32>}]} {
    %c0 = arith.constant 0 : index
    %c0_0 = arith.constant 0 : index
    %c0_1 = arith.constant 0 : index
    %0 = vector.load %arg2[%c0, %c0_0, %c0_1] : memref<1x8x32xbf16, #tpu.memory_space<vmem>>, vector<1x8x32xbf16>
    %1 = vector.shape_cast %0 : vector<1x8x32xbf16> to vector<8x32xbf16>
    %c0_2 = arith.constant 0 : index
    %c0_3 = arith.constant 0 : index
    %c0_4 = arith.constant 0 : index
    %c0_5 = arith.constant 0 : index
    %2 = vector.load %arg3[%c0_2, %c0_3, %c0_4, %c0_5] : memref<1x3x32x8xbf16, #tpu.memory_space<vmem>>, vector<1x1x32x8xbf16>
    %3 = vector.shape_cast %2 : vector<1x1x32x8xbf16> to vector<32x8xbf16>
    %cst = arith.constant dense<0.000000e+00> : vector<8x8xf32>
    %4 = tpu.matmul %1, %3, %cst {dimension_numbers = #tpu.dot_dimension_numbers<[1], [0], [0], [1], [0, 0, 1, 1], [], []>} : vector<8x32xbf16>, vector<32x8xbf16>, vector<8x8xf32> -> vector<8x8xf32>
    %c0_6 = arith.constant 0 : index
    %c0_7 = arith.constant 0 : index
    %c0_8 = arith.constant 0 : index
    %c0_9 = arith.constant 0 : index
    %5 = vector.load %arg4[%c0_6, %c0_7, %c0_8, %c0_9] : memref<1x3x1x8xf32, #tpu.memory_space<vmem>>, vector<1x1x1x8xf32>
    %6 = vector.shape_cast %5 : vector<1x1x1x8xf32> to vector<1x8xf32>
    %7 = vector.broadcast %6 : vector<1x8xf32> to vector<8x8xf32>
    %8 = arith.addf %4, %7 : vector<8x8xf32>
    %c0_10 = arith.constant 0 : index
    %c1 = arith.constant 1 : index
    %c0_11 = arith.constant 0 : index
    %c0_12 = arith.constant 0 : index
    %9 = vector.load %arg3[%c0_10, %c1, %c0_11, %c0_12] : memref<1x3x32x8xbf16, #tpu.memory_space<vmem>>, vector<1x1x32x8xbf16>
    %10 = vector.shape_cast %9 : vector<1x1x32x8xbf16> to vector<32x8xbf16>
    %cst_13 = arith.constant dense<0.000000e+00> : vector<8x8xf32>
    %11 = tpu.matmul %1, %10, %cst_13 {dimension_numbers = #tpu.dot_dimension_numbers<[1], [0], [0], [1], [0, 0, 1, 1], [], []>} : vector<8x32xbf16>, vector<32x8xbf16>, vector<8x8xf32> -> vector<8x8xf32>
    %c0_14 = arith.constant 0 : index
    %c1_15 = arith.constant 1 : index
    %c0_16 = arith.constant 0 : index
    %c0_17 = arith.constant 0 : index
    %12 = vector.load %arg4[%c0_14, %c1_15, %c0_16, %c0_17] : memref<1x3x1x8xf32, #tpu.memory_space<vmem>>, vector<1x1x1x8xf32>
    %13 = vector.shape_cast %12 : vector<1x1x1x8xf32> to vector<1x8xf32>
    %14 = vector.broadcast %13 : vector<1x8xf32> to vector<8x8xf32>
    %15 = arith.addf %11, %14 : vector<8x8xf32>
    %c0_18 = arith.constant 0 : index
    %c2 = arith.constant 2 : index
    %c0_19 = arith.constant 0 : index
    %c0_20 = arith.constant 0 : index
    %16 = vector.load %arg3[%c0_18, %c2, %c0_19, %c0_20] : memref<1x3x32x8xbf16, #tpu.memory_space<vmem>>, vector<1x1x32x8xbf16>
    %17 = vector.shape_cast %16 : vector<1x1x32x8xbf16> to vector<32x8xbf16>
    %cst_21 = arith.constant dense<0.000000e+00> : vector<8x8xf32>
    %18 = tpu.matmul %1, %17, %cst_21 {dimension_numbers = #tpu.dot_dimension_numbers<[1], [0], [0], [1], [0, 0, 1, 1], [], []>} : vector<8x32xbf16>, vector<32x8xbf16>, vector<8x8xf32> -> vector<8x8xf32>
    %c0_22 = arith.constant 0 : index
    %c2_23 = arith.constant 2 : index
    %c0_24 = arith.constant 0 : index
    %c0_25 = arith.constant 0 : index
    %19 = vector.load %arg4[%c0_22, %c2_23, %c0_24, %c0_25] : memref<1x3x1x8xf32, #tpu.memory_space<vmem>>, vector<1x1x1x8xf32>
    %20 = vector.shape_cast %19 : vector<1x1x1x8xf32> to vector<1x8xf32>
    %21 = vector.broadcast %20 : vector<1x8xf32> to vector<8x8xf32>
    %22 = arith.addf %18, %21 : vector<8x8xf32>
    %23 = arith.truncf %8 : vector<8x8xf32> to vector<8x8xbf16>
    %24 = arith.truncf %15 : vector<8x8xf32> to vector<8x8xbf16>
    %cst_26 = arith.constant dense<0.000000e+00> : vector<8x8xf32>
    %25 = tpu.matmul %23, %24, %cst_26 {dimension_numbers = #tpu.dot_dimension_numbers<[1], [1], [0], [0], [0, 0, 1, 0], [], []>} : vector<8x8xbf16>, vector<8x8xbf16>, vector<8x8xf32> -> vector<8x8xf32>
    %cst_27 = arith.constant dense<0xFF800000> : vector<8xf32>
    %26 = vector.multi_reduction <maximumf>, %25, %cst_27 [1] : vector<8x8xf32> to vector<8xf32>
    %27 = vector.shape_cast %26 : vector<8xf32> to vector<8x1xf32>
    %28 = vector.broadcast %27 : vector<8x1xf32> to vector<8x8xf32>
    %29 = arith.subf %25, %28 : vector<8x8xf32>
    %30 = math.exp %29 : vector<8x8xf32>
    %cst_28 = arith.constant dense<0.000000e+00> : vector<8xf32>
    %31 = vector.multi_reduction <add>, %30, %cst_28 [1] : vector<8x8xf32> to vector<8xf32>
    %32 = vector.shape_cast %31 : vector<8xf32> to vector<8x1xf32>
    %33 = tpu.reciprocal %32 {approx = true} : vector<8x1xf32> -> vector<8x1xf32>
    %34 = vector.broadcast %33 : vector<8x1xf32> to vector<8x8xf32>
    %35 = arith.mulf %30, %34 : vector<8x8xf32>
    %36 = arith.truncf %35 : vector<8x8xf32> to vector<8x8xbf16>
    %37 = arith.truncf %22 : vector<8x8xf32> to vector<8x8xbf16>
    %cst_29 = arith.constant dense<0.000000e+00> : vector<8x8xf32>
    %38 = tpu.matmul %36, %37, %cst_29 {dimension_numbers = #tpu.dot_dimension_numbers<[1], [0], [0], [1], [0, 0, 1, 1], [], []>} : vector<8x8xbf16>, vector<8x8xbf16>, vector<8x8xf32> -> vector<8x8xf32>
    %39 = arith.truncf %38 : vector<8x8xf32> to vector<8x8xbf16>
    %c0_30 = arith.constant 0 : index
    %c0_31 = arith.constant 0 : index
    %c0_32 = arith.constant 0 : index
    %40 = vector.load %arg5[%c0_30, %c0_31, %c0_32] : memref<1x8x32xbf16, #tpu.memory_space<vmem>>, vector<1x8x32xbf16>
    %41 = vector.shape_cast %40 : vector<1x8x32xbf16> to vector<8x32xbf16>
    %cst_33 = arith.constant dense<0.000000e+00> : vector<8x32xf32>
    %42 = tpu.matmul %39, %41, %cst_33 {dimension_numbers = #tpu.dot_dimension_numbers<[1], [0], [0], [1], [0, 0, 1, 1], [], []>} : vector<8x8xbf16>, vector<8x32xbf16>, vector<8x32xf32> -> vector<8x32xf32>
    %c0_i32 = arith.constant 0 : i32
    %43 = arith.cmpi eq, %arg1, %c0_i32 : i32
    %44 = arith.extui %43 : i1 to i32
    %c0_i32_34 = arith.constant 0 : i32
    %45 = arith.cmpi ne, %44, %c0_i32_34 : i32
    scf.if %45 {
      %cst_40 = arith.constant 0.000000e+00 : f32
      %52 = vector.broadcast %cst_40 : f32 to vector<8x32xf32>
      %c0_41 = arith.constant 0 : index
      %c0_42 = arith.constant 0 : index
      %53 = vector.load %arg8[%c0_41, %c0_42] : memref<8x32xf32, #tpu.memory_space<vmem>>, vector<8x32xf32>
      tpu.vector_store %arg8[%c0_41, %c0_42], %52 {strides = array<i32>} : memref<8x32xf32, #tpu.memory_space<vmem>>, vector<8x32xf32>,
    } else {
    }
    %c0_35 = arith.constant 0 : index
    %c0_36 = arith.constant 0 : index
    %46 = vector.load %arg8[%c0_35, %c0_36] : memref<8x32xf32, #tpu.memory_space<vmem>>, vector<8x32xf32>
    %47 = arith.addf %46, %42 : vector<8x32xf32>
    %c0_37 = arith.constant 0 : index
    %c0_38 = arith.constant 0 : index
    %48 = vector.load %arg8[%c0_37, %c0_38] : memref<8x32xf32, #tpu.memory_space<vmem>>, vector<8x32xf32>
    tpu.vector_store %arg8[%c0_37, %c0_38], %47 {strides = array<i32>} : memref<8x32xf32, #tpu.memory_space<vmem>>, vector<8x32xf32>,
    %c3_i32 = arith.constant 3 : i32
    %49 = arith.cmpi eq, %arg1, %c3_i32 : i32
    %50 = arith.extui %49 : i1 to i32
    %c0_i32_39 = arith.constant 0 : i32
    %51 = arith.cmpi ne, %50, %c0_i32_39 : i32
    scf.if %51 {
      %c0_40 = arith.constant 0 : index
      %c0_41 = arith.constant 0 : index
      %52 = vector.load %arg8[%c0_40, %c0_41] : memref<8x32xf32, #tpu.memory_space<vmem>>, vector<8x32xf32>
      %c0_42 = arith.constant 0 : index
      %c0_43 = arith.constant 0 : index
      %53 = vector.load %arg6[%c0_42, %c0_43] : memref<1x32xf32, #tpu.memory_space<vmem>>, vector<1x32xf32>
      %54 = vector.broadcast %53 : vector<1x32xf32> to vector<8x32xf32>
      %55 = arith.addf %52, %54 : vector<8x32xf32>
      %c0_44 = arith.constant 0 : index
      %c0_45 = arith.constant 0 : index
      %c0_46 = arith.constant 0 : index
      %56 = vector.load %arg7[%c0_44, %c0_45, %c0_46] : memref<1x8x32xf32, #tpu.memory_space<vmem>>, vector<1x8x32xf32>
      %57 = vector.shape_cast %56 : vector<1x8x32xf32> to vector<8x32xf32>
      %58 = vector.shape_cast %55 : vector<8x32xf32> to vector<1x8x32xf32>
      tpu.vector_store %arg7[%c0_44, %c0_45, %c0_46], %58 {strides = array<i32>} : memref<1x8x32xf32, #tpu.memory_space<vmem>>, vector<1x8x32xf32>,
    } else {
    }
    return
  }
  func.func @transform_0(%arg0: i32, %arg1: i32) -> (i32, i32, i32) {
    %c0_i32 = arith.constant 0 : i32
    %c0_i32_0 = arith.constant 0 : i32
    %c0_i32_1 = arith.constant 0 : i32
    return %arg0, %c0_i32, %c0_i32_0 : i32, i32, i32
  }
  func.func @transform_1(%arg0: i32, %arg1: i32) -> (i32, i32, i32, i32) {
    %c0_i32 = arith.constant 0 : i32
    %c0_i32_0 = arith.constant 0 : i32
    %c0_i32_1 = arith.constant 0 : i32
    %c0_i32_2 = arith.constant 0 : i32
    return %arg1, %c0_i32, %c0_i32_0, %c0_i32_1 : i32, i32, i32, i32
  }
  func.func @transform_2(%arg0: i32, %arg1: i32) -> (i32, i32, i32, i32) {
    %c0_i32 = arith.constant 0 : i32
    %c0_i32_0 = arith.constant 0 : i32
    %c0_i32_1 = arith.constant 0 : i32
    %c0_i32_2 = arith.constant 0 : i32
    return %arg1, %c0_i32, %c0_i32_0, %c0_i32_1 : i32, i32, i32, i32
  }
  func.func @transform_3(%arg0: i32, %arg1: i32) -> (i32, i32, i32) {
    %c0_i32 = arith.constant 0 : i32
    %c0_i32_0 = arith.constant 0 : i32
    %c0_i32_1 = arith.constant 0 : i32
    return %arg1, %c0_i32, %c0_i32_0 : i32, i32, i32
  }
  func.func @transform_4(%arg0: i32, %arg1: i32) -> (i32, i32) {
    %c0_i32 = arith.constant 0 : i32
    %c0_i32_0 = arith.constant 0 : i32
    %c0_i32_1 = arith.constant 0 : i32
    return %c0_i32, %c0_i32_0 : i32, i32
  }
  func.func @transform_5(%arg0: i32, %arg1: i32) -> (i32, i32, i32) {
    %c0_i32 = arith.constant 0 : i32
    %c0_i32_0 = arith.constant 0 : i32
    %c0_i32_1 = arith.constant 0 : i32
    return %arg0, %c0_i32, %c0_i32_0 : i32, i32, i32
  }
}

</mosaic_0001>

<llo_original>
// kernel: squeeze.5
$region0: #{squeeze.5}
  %s0 = inlined_call_operand.vmem [shape: f32[32], index: 0, kind: input, shape index: {}]
  %s1 = inlined_call_operand.vmem [shape: f32[4,1,8], index: 1, kind: output, shape index: {}]
  $region1: #{squeeze.5} parent=0
    #allocation0 [shape = 'u8[4096]{0}', space=vmem, size = 0x1000, scoped, tag = 'scoped mem for output reshape']
    #allocation1 [shape = 'u8[4096]{0}', space=vmem, size = 0x1000, scoped, tag = 'scoped mem for input reshape']
    %s3 = sshllo.u32 0, 1
    %v4 = vld [vmem:[%s0] sm:%s3]
    %5 = vst [vmem:[#allocation1] sm:%s3] %v4
    %v6 = vld [vmem:[#allocation1] sm:$0x1]
    %vm7 = vcmask 64512
    %8 = vst.msk [vmem:[#allocation0] sm:$0x1] %vm7, %v6
    %v9 = vld [vmem:[#allocation1] sm:$0x1]
    %10 = vrot.lane.b32.xlu0 %v9, 120
    %v11 = vpop.permute.xlu0 %10
    %vm12 = vcmask 64512
    %s13 = scalar_lea.vmem [#allocation0], 1
    %14 = vst.msk [vmem:[%s13] sm:$0x1] %vm12, %v11
    %v15 = vld [vmem:[#allocation1] sm:$0x1]
    %16 = vrot.lane.b32.xlu0 %v15, 112
    %v17 = vpop.permute.xlu0 %16
    %vm18 = vcmask 64512
    %s19 = scalar_lea.vmem [#allocation0], 2
    %20 = vst.msk [vmem:[%s19] sm:$0x1] %vm18, %v17
    %v21 = vld [vmem:[#allocation1] sm:$0x1]
    %22 = vrot.lane.b32.xlu0 %v21, 104
    %v23 = vpop.permute.xlu0 %22
    %vm24 = vcmask 64512
    %s25 = scalar_lea.vmem [#allocation0], 3
    %26 = vst.msk [vmem:[%s25] sm:$0x1] %vm24, %v23
    %s28 = sshllo.u32 0, 4
    %v30 = vld [vmem:[#allocation0] sm:%s28]
    %s31 = sshllo.u32 0, 4
    %32 = vst [vmem:[%s1] sm:%s31] %v30

// kernel: ms_attention.1
$region0: #{ms_attention.1}
  #allocation0 [shape = 'u32[]', space=smem, size = 0x4, offset = 0x4, fixed_abs, tag = 'smem constant byte address 0x4 - core index']
  #allocation1 [shape = 'u32[144,128]{1,0:T(1,128)}', space=vmem, size = 0x12000, scoped, tag = 'internal scratch']
  #allocation2 [shape = 'f32[8,32]{1,0:T(8,128)}', space=vmem, size = 0x1000, scoped, tag = 'scratch operand']
  %s0 = inlined_call_operand.vmem [shape: bf16[2,8,32], index: 0, kind: input, shape index: {}]
  %s1 = inlined_call_operand.vmem [shape: bf16[4,3,32,8], index: 1, kind: input, shape index: {}]
  %s2 = inlined_call_operand.vmem [shape: f32[4,3,1,8], index: 2, kind: input, shape index: {}]
  %s3 = inlined_call_operand.vmem [shape: bf16[4,8,32], index: 3, kind: input, shape index: {}]
  %s4 = inlined_call_operand.vmem [shape: f32[1,32], index: 4, kind: input, shape index: {}]
  %s5 = inlined_call_operand.hbm [shape: f32[2,8,32], index: 5, kind: output, shape index: {}]
  %s6 = sld [smem:[#allocation0]]
  $region61: #{ms_attention.1} parent=0
    _
  %s8 = ssub.s32 1, %s6
  %s9 = scalar_select 0, %s8, %s6
  $region1: #{ms_attention.1} parent=0
    #allocation3 [shape = 'u8[8192]{0}', space=vmem, size = 0x2000, scoped, tag = 'output window, operand 0']
    #allocation4 [shape = 's32[2]{0}', space=sflag, size = 0x8, scoped, tag = 'scoped memory for ms_attention.1']
    %10 = vsyncpa [#allocation4], 0
    %s11 = scalar_lea.sflag [#allocation4], 1
    %12 = vsyncpa %s11, 0
    loop: start=0, step=1, limit=10
    $region2: #{ms_attention.1} parent=1 // loop_pre_header
      _
    $region3: #{ms_attention.1} parent=1 // loop_header
      %s14 = sphi 0, %s18
      %p15 = scmp.ge.s32.totalorder %s14, 10
      %s21 = sphi 0, %s33
      %s22 = sphi 0, %s29
      %s23 = sphi 0, %s21
      %s24 = sphi 0, %s22
      %s25 = sphi 0, %s23
      %s26 = sphi 0, %s24
      %s36 = sphi 0, %s38
      %s39 = sphi 0, %s36
      %s40 = sphi 0, %s39
      %s56 = sphi 0, %s40
      %s62 = sphi 0, %s64
      %s65 = sphi 0, %s62
      %s66 = sphi 0, %s65
      %s82 = sphi 0, %s66
      %s88 = sphi 0, %s90
      %s91 = sphi 0, %s88
      %s92 = sphi 0, %s91
      %s108 = sphi 0, %s92
      %s114 = sphi 0, %s116
      %s117 = sphi 0, %s114
      %s118 = sphi 0, %s117
      %s134 = sphi 0, %s118
      %s138 = sphi 0, %s138
      %s140 = sphi 0, %s138
      %s141 = sphi 0, %s140
      %s155 = sphi 0, %s141
      %s161 = sphi 0, %s163
      %s164 = sphi 0, %s161
      %s165 = sphi 0, %s164
      %s181 = sphi 0, %s165
    $region4: #{ms_attention.1} parent=1 // loop_header_branch
      %17 = sbr.rel (%p15) target = $region8
    $region5: #{ms_attention.1} parent=1 // loop_body
      %s19 = ssub.s32 %s14, 1
      %s20 = ssub.s32 %s14, 2
      %s27 = sadd.s32 1, %s22
      %p28 = scmp.ge.s32.totalorder %s27, 4
      %s29 = scalar_select %p28, 0, %s27
      %s30 = sadd.s32 1, %s21
      %s31 = scalar_select %p28, %s30, %s21
      %p32 = scmp.ge.s32.totalorder %s31, 2
      %s33 = scalar_select %p32, 0, %s31
      %s34 = ssub.s32 %s21, %s33
      %p35 = scmp.eq.s32.totalorder %s34, 0
      %s37 = sadd.s32 %s36, 1
      %s38 = scalar_select %p35, %s36, %s37
      %p41 = pneg %p35
      %p42 = scmp.eq.s32.totalorder %s14, 7
      %p43 = por %p41, %p42
      %p44 = scmp.ne.s32.totalorder %s36, %s39
      %p45 = scmp.eq.s32.totalorder %s14, 0
      %p46 = por %p44, %p45
      %p47 = scmp.ne.s32.totalorder %s36, %s39
      %p48 = scmp.eq.s32.totalorder %s19, 7
      %p49 = por %p47, %p48
      %p50 = scmp.ne.s32.totalorder %s39, %s40
      %p51 = scmp.eq.s32.totalorder %s19, 0
      %p52 = por %p50, %p51
      %p53 = scmp.ne.s32.totalorder %s39, %s40
      %p54 = scmp.eq.s32.totalorder %s20, 7
      %p55 = por %p53, %p54
      %p57 = scmp.ne.s32.totalorder %s40, %s56
      %p58 = scmp.eq.s32.totalorder %s20, 0
      %p59 = por %p57, %p58
      %s60 = ssub.s32 %s22, %s29
      %p61 = scmp.eq.s32.totalorder %s60, 0
      %s63 = sadd.s32 %s62, 1
      %s64 = scalar_select %p61, %s62, %s63
      %p67 = pneg %p61
      %p68 = scmp.eq.s32.totalorder %s14, 7
      %p69 = por %p67, %p68
      %p70 = scmp.ne.s32.totalorder %s62, %s65
      %p71 = scmp.eq.s32.totalorder %s14, 0
      %p72 = por %p70, %p71
      %p73 = scmp.ne.s32.totalorder %s62, %s65
      %p74 = scmp.eq.s32.totalorder %s19, 7
      %p75 = por %p73, %p74
      %p76 = scmp.ne.s32.totalorder %s65, %s66
      %p77 = scmp.eq.s32.totalorder %s19, 0
      %p78 = por %p76, %p77
      %p79 = scmp.ne.s32.totalorder %s65, %s66
      %p80 = scmp.eq.s32.totalorder %s20, 7
      %p81 = por %p79, %p80
      %p83 = scmp.ne.s32.totalorder %s66, %s82
      %p84 = scmp.eq.s32.totalorder %s20, 0
      %p85 = por %p83, %p84
      %s86 = ssub.s32 %s22, %s29
      %p87 = scmp.eq.s32.totalorder %s86, 0
      %s89 = sadd.s32 %s88, 1
      %s90 = scalar_select %p87, %s88, %s89
      %p93 = pneg %p87
      %p94 = scmp.eq.s32.totalorder %s14, 7
      %p95 = por %p93, %p94
      %p96 = scmp.ne.s32.totalorder %s88, %s91
      %p97 = scmp.eq.s32.totalorder %s14, 0
      %p98 = por %p96, %p97
      %p99 = scmp.ne.s32.totalorder %s88, %s91
      %p100 = scmp.eq.s32.totalorder %s19, 7
      %p101 = por %p99, %p100
      %p102 = scmp.ne.s32.totalorder %s91, %s92
      %p103 = scmp.eq.s32.totalorder %s19, 0
      %p104 = por %p102, %p103
      %p105 = scmp.ne.s32.totalorder %s91, %s92
      %p106 = scmp.eq.s32.totalorder %s20, 7
      %p107 = por %p105, %p106
      %p109 = scmp.ne.s32.totalorder %s92, %s108
      %p110 = scmp.eq.s32.totalorder %s20, 0
      %p111 = por %p109, %p110
      %s112 = ssub.s32 %s22, %s29
      %p113 = scmp.eq.s32.totalorder %s112, 0
      %s115 = sadd.s32 %s114, 1
      %s116 = scalar_select %p113, %s114, %s115
      %p119 = pneg %p113
      %p120 = scmp.eq.s32.totalorder %s14, 7
      %p121 = por %p119, %p120
      %p122 = scmp.ne.s32.totalorder %s114, %s117
      %p123 = scmp.eq.s32.totalorder %s14, 0
      %p124 = por %p122, %p123
      %p125 = scmp.ne.s32.totalorder %s114, %s117
      %p126 = scmp.eq.s32.totalorder %s19, 7
      %p127 = por %p125, %p126
      %p128 = scmp.ne.s32.totalorder %s117, %s118
      %p129 = scmp.eq.s32.totalorder %s19, 0
      %p130 = por %p128, %p129
      %p131 = scmp.ne.s32.totalorder %s117, %s118
      %p132 = scmp.eq.s32.totalorder %s20, 7
      %p133 = por %p131, %p132
      %p135 = scmp.ne.s32.totalorder %s118, %s134
      %p136 = scmp.eq.s32.totalorder %s20, 0
      %p137 = por %p135, %p136
      %s139 = sadd.s32 %s138, 1
      %p142 = scmp.eq.s32.totalorder %s14, 7
      %p143 = scmp.ne.s32.totalorder %s138, %s140
      %p144 = scmp.eq.s32.totalorder %s14, 0
      %p145 = por %p143, %p144
      %p146 = scmp.ne.s32.totalorder %s138, %s140
      %p147 = scmp.eq.s32.totalorder %s19, 7
      %p148 = por %p146, %p147
      %p149 = scmp.ne.s32.totalorder %s140, %s141
      %p150 = scmp.eq.s32.totalorder %s19, 0
      %p151 = por %p149, %p150
      %p152 = scmp.ne.s32.totalorder %s140, %s141
      %p153 = scmp.eq.s32.totalorder %s20, 7
      %p154 = por %p152, %p153
      %p156 = scmp.ne.s32.totalorder %s141, %s155
      %p157 = scmp.eq.s32.totalorder %s20, 0
      %p158 = por %p156, %p157
      %s159 = ssub.s32 %s21, %s33
      %p160 = scmp.eq.s32.totalorder %s159, 0
      %s162 = sadd.s32 %s161, 1
      %s163 = scalar_select %p160, %s161, %s162
      %p166 = pneg %p160
      %p167 = scmp.eq.s32.totalorder %s14, 7
      %p168 = por %p166, %p167
      %p169 = scmp.ne.s32.totalorder %s161, %s164
      %p170 = scmp.eq.s32.totalorder %s14, 0
      %p171 = por %p169, %p170
      %p172 = scmp.ne.s32.totalorder %s161, %s164
      %p173 = scmp.eq.s32.totalorder %s19, 7
      %p174 = por %p172, %p173
      %p175 = scmp.ne.s32.totalorder %s164, %s165
      %p176 = scmp.eq.s32.totalorder %s19, 0
      %p177 = por %p175, %p176
      %p178 = scmp.ne.s32.totalorder %s164, %s165
      %p179 = scmp.eq.s32.totalorder %s20, 7
      %p180 = por %p178, %p179
      %p182 = scmp.ne.s32.totalorder %s165, %s181
      %p183 = scmp.eq.s32.totalorder %s20, 0
      %p184 = por %p182, %p183
      %p185 = scmp.le.s32.totalorder 1, %s14
      %p186 = scmp.lt.s32.totalorder %s14, 9
      %p187 = pnand %p185, %p186
      %p188 = pneg %p187
      // Predicated region
      $region9: #{ms_attention.1} parent=5 // pred_check
        _
      $region10: #{ms_attention.1} parent=5 // pred_check_branch
        %190 = sbr.rel (%p187) target = $region12
      $region11: #{ms_attention.1} parent=5 // pred_region
        %s191 = ssub.s32 %s14, 1
        // Predicated region
        $region13: #{ms_attention.1} parent=11 // pred_check
          %p192 = pneg %p151
        $region14: #{ms_attention.1} parent=11 // pred_check_branch
          %194 = sbr.rel (%p192) target = $region16
        $region15: #{ms_attention.1} parent=11 // pred_region
          _
        $region16: #{ms_attention.1} parent=11 // pred_fallthru
          _
      $region12: #{ms_attention.1} parent=5 // pred_fallthru
        _
      %p195 = scmp.lt.s32.totalorder %s14, 8
      // Predicated region
      $region17: #{ms_attention.1} parent=5 // pred_check
        %p196 = pneg %p195
      $region18: #{ms_attention.1} parent=5 // pred_check_branch
        %198 = sbr.rel (%p196) target = $region20
      $region19: #{ms_attention.1} parent=5 // pred_region
        // Predicated region
        $region21: #{ms_attention.1} parent=19 // pred_check
          %p199 = pneg %p46
        $region22: #{ms_attention.1} parent=19 // pred_check_branch
          %201 = sbr.rel (%p199) target = $region24
        $region23: #{ms_attention.1} parent=19 // pred_region
          %p202 = scmp.lt.s32.totalorder %s21, 1
          %s203 = scalar_select %p202, %s21, 1
          %s204 = smul.addr %s203, 4
          %s205 = scalar_lea.vmem %s0, %s204
        $region24: #{ms_attention.1} parent=19 // pred_fallthru
          _
        // Predicated region
        $region25: #{ms_attention.1} parent=19 // pred_check
          %p206 = pneg %p72
        $region26: #{ms_attention.1} parent=19 // pred_check_branch
          %208 = sbr.rel (%p206) target = $region28
        $region27: #{ms_attention.1} parent=19 // pred_region
          %p209 = scmp.lt.s32.totalorder %s22, 3
          %s210 = scalar_select %p209, %s22, 3
          %s211 = smul.addr %s210, 12
          %s212 = smul.addr %s211, 4
          %s213 = scalar_lea.vmem %s1, %s212
        $region28: #{ms_attention.1} parent=19 // pred_fallthru
          _
        // Predicated region
        $region29: #{ms_attention.1} parent=19 // pred_check
          %p214 = pneg %p98
        $region30: #{ms_attention.1} parent=19 // pred_check_branch
          %216 = sbr.rel (%p214) target = $region32
        $region31: #{ms_attention.1} parent=19 // pred_region
          %p217 = scmp.lt.s32.totalorder %s22, 3
          %s218 = scalar_select %p217, %s22, 3
          %s219 = smul.addr %s218, 3
          %s220 = scalar_lea.vmem %s2, %s219
        $region32: #{ms_attention.1} parent=19 // pred_fallthru
          _
        // Predicated region
        $region33: #{ms_attention.1} parent=19 // pred_check
          %p221 = pneg %p124
        $region34: #{ms_attention.1} parent=19 // pred_check_branch
          %223 = sbr.rel (%p221) target = $region36
        $region35: #{ms_attention.1} parent=19 // pred_region
          %p224 = scmp.lt.s32.totalorder %s22, 3
          %s225 = scalar_select %p224, %s22, 3
          %s226 = smul.addr %s225, 4
          %s227 = scalar_lea.vmem %s3, %s226
        $region36: #{ms_attention.1} parent=19 // pred_fallthru
          _
      $region20: #{ms_attention.1} parent=5 // pred_fallthru
        _
      %p228 = scmp.le.s32.totalorder 1, %s14
      %p229 = scmp.lt.s32.totalorder %s14, 9
      %p230 = pnand %p228, %p229
      %p231 = pneg %p230
      // Predicated region
      $region37: #{ms_attention.1} parent=5 // pred_check
        _
      $region38: #{ms_attention.1} parent=5 // pred_check_branch
        %233 = sbr.rel (%p230) target = $region40
      $region39: #{ms_attention.1} parent=5 // pred_region
        %s234 = ssub.s32 %s14, 1
        %p235 = scmp.lt.s32.totalorder %s23, 1
        %s236 = scalar_select %p235, %s23, 1
        %s237 = smul.addr %s236, 4
        %s238 = scalar_lea.vmem %s0, %s237
        %p239 = pneg %p52
        %p240 = pneg %p49
        %p241 = scmp.lt.s32.totalorder %s24, 3
        %s242 = scalar_select %p241, %s24, 3
        %s243 = smul.addr %s242, 12
        %s244 = smul.addr %s243, 4
        %s245 = scalar_lea.vmem %s1, %s244
        %p246 = pneg %p78
        %p247 = pneg %p75
        %p248 = scmp.lt.s32.totalorder %s24, 3
        %s249 = scalar_select %p248, %s24, 3
        %s250 = smul.addr %s249, 3
        %s251 = scalar_lea.vmem %s2, %s250
        %p252 = pneg %p104
        %p253 = pneg %p101
        %p254 = scmp.lt.s32.totalorder %s24, 3
        %s255 = scalar_select %p254, %s24, 3
        %s256 = smul.addr %s255, 4
        %s257 = scalar_lea.vmem %s3, %s256
        %p258 = pneg %p130
        %p259 = pneg %p127
        %p260 = pneg %p151
        %p261 = pneg %p148
        %p262 = pneg %p177
        %p263 = pneg %p174
        %s264 = sand.u32 %s164, 1
        %s265 = scalar_lea.sflag [#allocation4], %s264
        %s266 = sand.u32 %s164, 1
        %s267 = smul.addr %s266, 8
        %s268 = scalar_lea.vmem [#allocation3], %s267
        %p269 = scmp.lt.s32.totalorder %s23, 1
        %s270 = scalar_select %p269, %s23, 1
        %s271 = smul.addr %s270, 4
        %s272 = scalar_lea.vmem %s0, %s271
        %p273 = scmp.lt.s32.totalorder %s24, 3
        %s274 = scalar_select %p273, %s24, 3
        %s275 = smul.addr %s274, 12
        %s276 = smul.addr %s275, 4
        %s277 = scalar_lea.vmem %s1, %s276
        %p278 = scmp.lt.s32.totalorder %s24, 3
        %s279 = scalar_select %p278, %s24, 3
        %s280 = smul.addr %s279, 3
        %s281 = scalar_lea.vmem %s2, %s280
        %p282 = scmp.lt.s32.totalorder %s24, 3
        %s283 = scalar_select %p282, %s24, 3
        %s284 = smul.addr %s283, 4
        %s285 = scalar_lea.vmem %s3, %s284
        %v287 = vld [vmem:[%s272] sm:$0xf]
        %v288 = vld [vmem:[%s277] sm:$0xf]
        %v289 = vld [vmem:[%s277 + $0x4] sm:$0xf]
        %v290 = vld [vmem:[%s277 + $0x8] sm:$0xf]
        %v291 = vld [vmem:[%s277 + $0xc] sm:$0xf]
        %v292 = vld [vmem:[%s281] sm:$0x1]
        %v294 = vlaneseq
        %v295 = vshrl.u32 %v294, 7
        %v296 = vsub.s32 0, %v295
        %v297 = vrot.slane %v292, %v296
        %v303 = vunpack.c.l.b16 %v288
        %v304 = vunpack.c.l.b16 %v289
        %v305 = vunpack.c.l.b16 %v290
        %v306 = vunpack.c.l.b16 %v291
        %v307 = vpack.c.b16 %v304, %v303
        %v308 = vpack.c.b16 %v306, %v305
        %vm311 = vcmask 261120
        %v313 = vsel %vm311, %v287, 0
        %315 = vmatprep.subr.bf16.mxu0 0
        %316 = vmatpush1.bf16.msra.mxu0 %v307
        %317 = vmatprep.subr.bf16.mxu0 0
        %318 = vmatpush1.bf16.msra.mxu0 %v308
        %319 = vmatprep.subr.bf16.mxu0 0
        %320 = vmatpush1.bf16.msra.mxu0 0
        %321 = vmatprep.subr.bf16.mxu0 0
        %322 = vmatpush1.bf16.msra.mxu0 0
        %323 = vmatprep.subr.bf16.mxu0 0
        %324 = vmatpush1.bf16.msra.mxu0 0
        %325 = vmatprep.subr.bf16.mxu0 0
        %326 = vmatpush1.bf16.msra.mxu0 0
        %327 = vmatprep.subr.bf16.mxu0 0
        %328 = vmatpush1.bf16.msra.mxu0 0
        %329 = vmatprep.subr.bf16.mxu0 0
        %330 = vmatpush1.bf16.msra.mxu0 0
        %331 = vmatprep.subr.bf16.mxu0 0
        %332 = vmatpush1.bf16.msra.mxu0 0
        %333 = vmatprep.subr.bf16.mxu0 0
        %334 = vmatpush1.bf16.msra.mxu0 0
        %335 = vmatprep.subr.bf16.mxu0 0
        %336 = vmatpush1.bf16.msra.mxu0 0
        %337 = vmatprep.subr.bf16.mxu0 0
        %338 = vmatpush1.bf16.msra.mxu0 0
        %339 = vmatprep.subr.bf16.mxu0 0
        %340 = vmatpush1.bf16.msra.mxu0 0
        %341 = vmatprep.subr.bf16.mxu0 0
        %342 = vmatpush1.bf16.msra.mxu0 0
        %343 = vmatprep.subr.bf16.mxu0 0
        %344 = vmatpush1.bf16.msra.mxu0 0
        %345 = vmatprep.subr.bf16.mxu0 0
        %346 = vmatpush1.bf16.msra.mxu0 0
        %347 = vmatprep.mubr.bf16.mxu0 0
        %348 = vmatmul.mubr.bf16.gmra.mrb[0].mxu0 %v313
        %v349 = vpop.f32.mrb[0].mxu0
        %v350 = vadd.f32 %v297, %v349
        %v351 = vpop.f32.mrb[0].mxu0
        %v352 = vpop.f32.mrb[0].mxu0
        %v353 = vpop.f32.mrb[0].mxu0
        %354 = vdwg.mxu0
        %s355 = scalar_lea.vmem %s277, 16
        %v356 = vld [vmem:[%s355] sm:$0xf]
        %v357 = vld [vmem:[%s355 + $0x4] sm:$0xf]
        %v358 = vld [vmem:[%s355 + $0x8] sm:$0xf]
        %v359 = vld [vmem:[%s355 + $0xc] sm:$0xf]
        %s360 = scalar_lea.vmem %s281, 1
        %v361 = vld [vmem:[%s360] sm:$0x1]
        %v363 = vlaneseq
        %v364 = vshrl.u32 %v363, 7
        %v365 = vsub.s32 0, %v364
        %v366 = vrot.slane %v361, %v365
        %v372 = vunpack.c.l.b16 %v356
        %v373 = vunpack.c.l.b16 %v357
        %v374 = vunpack.c.l.b16 %v358
        %v375 = vunpack.c.l.b16 %v359
        %v376 = vpack.c.b16 %v373, %v372
        %v377 = vpack.c.b16 %v375, %v374
        %380 = vmatprep.subr.bf16.mxu0 0
        %381 = vmatpush1.bf16.msra.mxu0 %v376
        %382 = vmatprep.subr.bf16.mxu0 0
        %383 = vmatpush1.bf16.msra.mxu0 %v377
        %384 = vmatprep.subr.bf16.mxu0 0
        %385 = vmatpush1.bf16.msra.mxu0 0
        %386 = vmatprep.subr.bf16.mxu0 0
        %387 = vmatpush1.bf16.msra.mxu0 0
        %388 = vmatprep.subr.bf16.mxu0 0
        %389 = vmatpush1.bf16.msra.mxu0 0
        %390 = vmatprep.subr.bf16.mxu0 0
        %391 = vmatpush1.bf16.msra.mxu0 0
        %392 = vmatprep.subr.bf16.mxu0 0
        %393 = vmatpush1.bf16.msra.mxu0 0
        %394 = vmatprep.subr.bf16.mxu0 0
        %395 = vmatpush1.bf16.msra.mxu0 0
        %396 = vmatprep.subr.bf16.mxu0 0
        %397 = vmatpush1.bf16.msra.mxu0 0
        %398 = vmatprep.subr.bf16.mxu0 0
        %399 = vmatpush1.bf16.msra.mxu0 0
        %400 = vmatprep.subr.bf16.mxu0 0
        %401 = vmatpush1.bf16.msra.mxu0 0
        %402 = vmatprep.subr.bf16.mxu0 0
        %403 = vmatpush1.bf16.msra.mxu0 0
        %404 = vmatprep.subr.bf16.mxu0 0
        %405 = vmatpush1.bf16.msra.mxu0 0
        %406 = vmatprep.subr.bf16.mxu0 0
        %407 = vmatpush1.bf16.msra.mxu0 0
        %408 = vmatprep.subr.bf16.mxu0 0
        %409 = vmatpush1.bf16.msra.mxu0 0
        %410 = vmatprep.subr.bf16.mxu0 0
        %411 = vmatpush1.bf16.msra.mxu0 0
        %412 = vmatprep.mubr.bf16.mxu0 0
        %413 = vmatmul.mubr.bf16.gmra.mrb[0].mxu0 %v313
        %v414 = vpop.f32.mrb[0].mxu0
        %v415 = vadd.f32 %v366, %v414
        %v416 = vpop.f32.mrb[0].mxu0
        %v417 = vpop.f32.mrb[0].mxu0
        %v418 = vpop.f32.mrb[0].mxu0
        %419 = vdwg.mxu0
        %s420 = scalar_lea.vmem %s277, 32
        %v421 = vld [vmem:[%s420] sm:$0xf]
        %v422 = vld [vmem:[%s420 + $0x4] sm:$0xf]
        %v423 = vld [vmem:[%s420 + $0x8] sm:$0xf]
        %v424 = vld [vmem:[%s420 + $0xc] sm:$0xf]
        %s425 = scalar_lea.vmem %s281, 2
        %v426 = vld [vmem:[%s425] sm:$0x1]
        %v428 = vlaneseq
        %v429 = vshrl.u32 %v428, 7
        %v430 = vsub.s32 0, %v429
        %v431 = vrot.slane %v426, %v430
        %v437 = vunpack.c.l.b16 %v421
        %v438 = vunpack.c.l.b16 %v422
        %v439 = vunpack.c.l.b16 %v423
        %v440 = vunpack.c.l.b16 %v424
        %v441 = vpack.c.b16 %v438, %v437
        %v442 = vpack.c.b16 %v440, %v439
        %445 = vmatprep.subr.bf16.mxu0 0
        %446 = vmatpush1.bf16.msra.mxu0 %v441
        %447 = vmatprep.subr.bf16.mxu0 0
        %448 = vmatpush1.bf16.msra.mxu0 %v442
        %449 = vmatprep.subr.bf16.mxu0 0
        %450 = vmatpush1.bf16.msra.mxu0 0
        %451 = vmatprep.subr.bf16.mxu0 0
        %452 = vmatpush1.bf16.msra.mxu0 0
        %453 = vmatprep.subr.bf16.mxu0 0
        %454 = vmatpush1.bf16.msra.mxu0 0
        %455 = vmatprep.subr.bf16.mxu0 0
        %456 = vmatpush1.bf16.msra.mxu0 0
        %457 = vmatprep.subr.bf16.mxu0 0
        %458 = vmatpush1.bf16.msra.mxu0 0
        %459 = vmatprep.subr.bf16.mxu0 0
        %460 = vmatpush1.bf16.msra.mxu0 0
        %461 = vmatprep.subr.bf16.mxu0 0
        %462 = vmatpush1.bf16.msra.mxu0 0
        %463 = vmatprep.subr.bf16.mxu0 0
        %464 = vmatpush1.bf16.msra.mxu0 0
        %465 = vmatprep.subr.bf16.mxu0 0
        %466 = vmatpush1.bf16.msra.mxu0 0
        %467 = vmatprep.subr.bf16.mxu0 0
        %468 = vmatpush1.bf16.msra.mxu0 0
        %469 = vmatprep.subr.bf16.mxu0 0
        %470 = vmatpush1.bf16.msra.mxu0 0
        %471 = vmatprep.subr.bf16.mxu0 0
        %472 = vmatpush1.bf16.msra.mxu0 0
        %473 = vmatprep.subr.bf16.mxu0 0
        %474 = vmatpush1.bf16.msra.mxu0 0
        %475 = vmatprep.subr.bf16.mxu0 0
        %476 = vmatpush1.bf16.msra.mxu0 0
        %477 = vmatprep.mubr.bf16.mxu0 0
        %478 = vmatmul.mubr.bf16.gmra.mrb[0].mxu0 %v313
        %v479 = vpop.f32.mrb[0].mxu0
        %v480 = vadd.f32 %v431, %v479
        %v481 = vpop.f32.mrb[0].mxu0
        %v482 = vpop.f32.mrb[0].mxu0
        %v483 = vpop.f32.mrb[0].mxu0
        %484 = vdwg.mxu0
        %v485 = vpack.c.bf16 %v350, %v350
        %v486 = vpack.c.bf16 %v415, %v415
        %vm487 = vcmask 64512
        %v489 = vsel %vm487, %v485, 0
        %v492 = vsel %vm487, %v486, 0
        %494 = vmatprep.subr.bf16.mxu0 0
        %495 = vmatpush1.bf16.xpose.msra.mxu0 %v492
        %496 = vmatprep.subr.bf16.mxu0 0
        %497 = vmatpush1.bf16.xpose.msra.mxu0 0
        %498 = vmatprep.subr.bf16.mxu0 0
        %499 = vmatpush1.bf16.xpose.msra.mxu0 0
        %500 = vmatprep.subr.bf16.mxu0 0
        %501 = vmatpush1.bf16.xpose.msra.mxu0 0
        %502 = vmatprep.subr.bf16.mxu0 0
        %503 = vmatpush1.bf16.xpose.msra.mxu0 0
        %504 = vmatprep.subr.bf16.mxu0 0
        %505 = vmatpush1.bf16.xpose.msra.mxu0 0
        %506 = vmatprep.subr.bf16.mxu0 0
        %507 = vmatpush1.bf16.xpose.msra.mxu0 0
        %508 = vmatprep.subr.bf16.mxu0 0
        %509 = vmatpush1.bf16.xpose.msra.mxu0 0
        %510 = vmatprep.subr.bf16.mxu0 0
        %511 = vmatpush1.bf16.xpose.msra.mxu0 0
        %512 = vmatprep.subr.bf16.mxu0 0
        %513 = vmatpush1.bf16.xpose.msra.mxu0 0
        %514 = vmatprep.subr.bf16.mxu0 0
        %515 = vmatpush1.bf16.xpose.msra.mxu0 0
        %516 = vmatprep.subr.bf16.mxu0 0
        %517 = vmatpush1.bf16.xpose.msra.mxu0 0
        %518 = vmatprep.subr.bf16.mxu0 0
        %519 = vmatpush1.bf16.xpose.msra.mxu0 0
        %520 = vmatprep.subr.bf16.mxu0 0
        %521 = vmatpush1.bf16.xpose.msra.mxu0 0
        %522 = vmatprep.subr.bf16.mxu0 0
        %523 = vmatpush1.bf16.xpose.msra.mxu0 0
        %524 = vmatprep.subr.bf16.mxu0 0
        %525 = vmatpush1.bf16.xpose.msra.mxu0 0
        %526 = vmatprep.mubr.bf16.mxu0 0
        %527 = vmatmul.mubr.bf16.gmra.mrb[0].mxu0 %v489
        %v528 = vpop.f32.mrb[0].mxu0
        %v529 = vadd.f32 0.0, %v528
        %v530 = vpop.f32.mrb[0].mxu0
        %v531 = vpop.f32.mrb[0].mxu0
        %v532 = vpop.f32.mrb[0].mxu0
        %533 = vdwg.mxu0
        %v534 = vsel %vm487, %v529, -inf
        %535 = vmax.xlane.f32.xlu0 %v534
        %v536 = vpop.xlane.xlu0 %535
        %v537 = vsub.f32 %v529, %v536
        %v538 = vmul.f32 %v537, 1.442695
        %v539 = vpow.pop %v538
        %v540 = vsel %vm487, %v539, 0.0
        %541 = vadd.xlane.f32.xlu0 %v540
        %v542 = vpop.xlane.xlu0 %541
        %v543 = vrcp.pop %v542
        %v544 = vmul.f32 %v539, %v543
        %v545 = vpack.c.bf16 %v544, %v544
        %v546 = vpack.c.bf16 %v480, %v480
        %v548 = vsel %vm487, %v545, 0
        %vm550 = vcmask 1043456
        %v552 = vsel %vm550, %v546, 0
        %554 = vmatprep.subr.bf16.mxu0 0
        %555 = vmatpush1.bf16.msra.mxu0 %v552
        %556 = vmatprep.subr.bf16.mxu0 0
        %557 = vmatpush1.bf16.msra.mxu0 0
        %558 = vmatprep.subr.bf16.mxu0 0
        %559 = vmatpush1.bf16.msra.mxu0 0
        %560 = vmatprep.subr.bf16.mxu0 0
        %561 = vmatpush1.bf16.msra.mxu0 0
        %562 = vmatprep.subr.bf16.mxu0 0
        %563 = vmatpush1.bf16.msra.mxu0 0
        %564 = vmatprep.subr.bf16.mxu0 0
        %565 = vmatpush1.bf16.msra.mxu0 0
        %566 = vmatprep.subr.bf16.mxu0 0
        %567 = vmatpush1.bf16.msra.mxu0 0
        %568 = vmatprep.subr.bf16.mxu0 0
        %569 = vmatpush1.bf16.msra.mxu0 0
        %570 = vmatprep.subr.bf16.mxu0 0
        %571 = vmatpush1.bf16.msra.mxu0 0
        %572 = vmatprep.subr.bf16.mxu0 0
        %573 = vmatpush1.bf16.msra.mxu0 0
        %574 = vmatprep.subr.bf16.mxu0 0
        %575 = vmatpush1.bf16.msra.mxu0 0
        %576 = vmatprep.subr.bf16.mxu0 0
        %577 = vmatpush1.bf16.msra.mxu0 0
        %578 = vmatprep.subr.bf16.mxu0 0
        %579 = vmatpush1.bf16.msra.mxu0 0
        %580 = vmatprep.subr.bf16.mxu0 0
        %581 = vmatpush1.bf16.msra.mxu0 0
        %582 = vmatprep.subr.bf16.mxu0 0
        %583 = vmatpush1.bf16.msra.mxu0 0
        %584 = vmatprep.subr.bf16.mxu0 0
        %585 = vmatpush1.bf16.msra.mxu0 0
        %586 = vmatprep.mubr.bf16.mxu0 0
        %587 = vmatmul.mubr.bf16.gmra.mrb[0].mxu0 %v548
        %v588 = vpop.f32.mrb[0].mxu0
        %v589 = vadd.f32 0.0, %v588
        %v590 = vpop.f32.mrb[0].mxu0
        %v591 = vpop.f32.mrb[0].mxu0
        %v592 = vpop.f32.mrb[0].mxu0
        %593 = vdwg.mxu0
        %v594 = vpack.c.bf16 %v589, %v589
        %v595 = vld [vmem:[%s285] sm:$0xf]
        %v597 = vsel %vm487, %v594, 0
        %v600 = vsel %vm550, %v595, 0
        %602 = vmatprep.subr.bf16.mxu0 0
        %603 = vmatpush1.bf16.msra.mxu0 %v600
        %604 = vmatprep.subr.bf16.mxu0 0
        %605 = vmatpush1.bf16.msra.mxu0 0
        %606 = vmatprep.subr.bf16.mxu0 0
        %607 = vmatpush1.bf16.msra.mxu0 0
        %608 = vmatprep.subr.bf16.mxu0 0
        %609 = vmatpush1.bf16.msra.mxu0 0
        %610 = vmatprep.subr.bf16.mxu0 0
        %611 = vmatpush1.bf16.msra.mxu0 0
        %612 = vmatprep.subr.bf16.mxu0 0
        %613 = vmatpush1.bf16.msra.mxu0 0
        %614 = vmatprep.subr.bf16.mxu0 0
        %615 = vmatpush1.bf16.msra.mxu0 0
        %616 = vmatprep.subr.bf16.mxu0 0
        %617 = vmatpush1.bf16.msra.mxu0 0
        %618 = vmatprep.subr.bf16.mxu0 0
        %619 = vmatpush1.bf16.msra.mxu0 0
        %620 = vmatprep.subr.bf16.mxu0 0
        %621 = vmatpush1.bf16.msra.mxu0 0
        %622 = vmatprep.subr.bf16.mxu0 0
        %623 = vmatpush1.bf16.msra.mxu0 0
        %624 = vmatprep.subr.bf16.mxu0 0
        %625 = vmatpush1.bf16.msra.mxu0 0
        %626 = vmatprep.subr.bf16.mxu0 0
        %627 = vmatpush1.bf16.msra.mxu0 0
        %628 = vmatprep.subr.bf16.mxu0 0
        %629 = vmatpush1.bf16.msra.mxu0 0
        %630 = vmatprep.subr.bf16.mxu0 0
        %631 = vmatpush1.bf16.msra.mxu0 0
        %632 = vmatprep.subr.bf16.mxu0 0
        %633 = vmatpush1.bf16.msra.mxu0 0
        %634 = vmatprep.mubr.bf16.mxu0 0
        %635 = vmatmul.mubr.bf16.gmra.mrb[0].mxu0 %v597
        %v636 = vpop.f32.mrb[0].mxu0
        %v637 = vadd.f32 0.0, %v636
        %v638 = vpop.f32.mrb[0].mxu0
        %v639 = vpop.f32.mrb[0].mxu0
        %v640 = vpop.f32.mrb[0].mxu0
        %641 = vdwg.mxu0
        %p642 = scmp.eq.s32.totalorder %s24, 0
        // Predicated region
        $region41: #{ms_attention.1} parent=39 // pred_check
          %p643 = pneg %p642
        $region42: #{ms_attention.1} parent=39 // pred_check_branch
          %645 = sbr.rel (%p643) target = $region44
        $region43: #{ms_attention.1} parent=39 // pred_region
          %646 = vst.msk [vmem:[#allocation2] sm:$0xff] %vm311, 0.0
        $region44: #{ms_attention.1} parent=39 // pred_fallthru
          _
        %v647 = vld [vmem:[#allocation2] sm:$0xff]
        %v648 = vadd.f32 %v647, %v637
        %649 = vst.msk [vmem:[#allocation2] sm:$0xff] %vm311, %v648
        %p650 = scmp.eq.s32.totalorder %s24, 3
        // Predicated region
        $region45: #{ms_attention.1} parent=39 // pred_check
          %p651 = pneg %p650
        $region46: #{ms_attention.1} parent=39 // pred_check_branch
          %653 = sbr.rel (%p651) target = $region48
        $region47: #{ms_attention.1} parent=39 // pred_region
          %v654 = vld [vmem:[#allocation2] sm:$0xff]
          %v655 = vld [vmem:[%s4] sm:$0x1]
          %v657 = vlaneseq
          %v658 = vshrl.u32 %v657, 7
          %v659 = vsub.s32 0, %v658
          %v660 = vrot.slane %v655, %v659
          %v662 = vadd.f32 %v654, %v660
          %663 = vst.msk [vmem:[%s268] sm:$0xff] %vm311, %v662
        $region48: #{ms_attention.1} parent=39 // pred_fallthru
          _
        %s664 = sand.u32 %s164, 1
        %s665 = scalar_lea.sflag [#allocation4], %s664
        %s666 = sand.u32 %s164, 1
        %s667 = smul.addr %s666, 8
        %s668 = scalar_lea.vmem [#allocation3], %s667
        // Predicated region
        $region49: #{ms_attention.1} parent=39 // pred_check
          %p669 = pneg %p174
        $region50: #{ms_attention.1} parent=39 // pred_check_branch
          %671 = sbr.rel (%p669) target = $region52
        $region51: #{ms_attention.1} parent=39 // pred_region
          %s673 = ssub.s32 128, 128
          %674 = vsyncadd %s665, %s673
          %s675 = smul.addr %s23, 128
          %s676 = scalar_lea.hbm %s5, %s675
          %s678 = sshll.u32 %s668, 4
          %s679 = int_to_ptr.vmem [resolvable:$true] %s678
          %681 = dma.vmem_to_hbm [thread:$0]  %s679, 128, %s676, %s665
        $region52: #{ms_attention.1} parent=39 // pred_fallthru
          _
      $region40: #{ms_attention.1} parent=5 // pred_fallthru
        _
      %p682 = scmp.le.s32.totalorder 2, %s14
      // Predicated region
      $region53: #{ms_attention.1} parent=5 // pred_check
        %p683 = pneg %p682
      $region54: #{ms_attention.1} parent=5 // pred_check_branch
        %685 = sbr.rel (%p683) target = $region56
      $region55: #{ms_attention.1} parent=5 // pred_region
        %s686 = ssub.s32 %s14, 2
        // Predicated region
        $region57: #{ms_attention.1} parent=55 // pred_check
          %p687 = pneg %p180
        $region58: #{ms_attention.1} parent=55 // pred_check_branch
          %689 = sbr.rel (%p687) target = $region60
        $region59: #{ms_attention.1} parent=55 // pred_region
          %s690 = sand.u32 %s165, 1
          %s691 = scalar_lea.sflag [#allocation4], %s690
          %s692 = sand.u32 %s165, 1
          %s693 = smul.addr %s692, 8
          %s694 = scalar_lea.vmem [#allocation3], %s693
          %695 = dma.done %s691, 128
        $region60: #{ms_attention.1} parent=55 // pred_fallthru
          _
      $region56: #{ms_attention.1} parent=5 // pred_fallthru
        _
    $region6: #{ms_attention.1} parent=1 // loop_footer
      %s18 = sadd.s32 1, %s14
    $region7: #{ms_attention.1} parent=1 // loop_footer_branch
      %13 = sbr.rel target = $region3
    $region8: #{ms_attention.1} parent=1 // loop_exit
      _
    %696 = vsyncpa [#allocation4], 1
    %s697 = scalar_lea.sflag [#allocation4], 1
    %698 = vsyncpa %s697, 1

</llo_original>
